<compile_context>
chip_gen: v7x
topology: tpu7x:2x2x1
jax: 0.10.0
libtpu: 0.0.40
codegen_flags: <defaults>
</compile_context>

<pallas_src>
import functools

import jax
import jax.numpy as jnp
from jax.experimental import pallas as pl
from jax.experimental.pallas import tpu as pltpu

_LANE = 128       # vreg lane width
_SUBLANE_F32 = 8  # f32 sublane count


def _round_up(x, m):
    return ((x + m - 1) // m) * m


def _choose_batch_tile(B, batch_tile, sub):
    """Sublane-aligned batch tile, <= batch_tile; prefers >= 2 grid steps
    (v7x megacore) whenever the batch is big enough to split."""
    tb = _round_up(min(max(batch_tile, 1), max(B, 1)), sub)
    if _round_up(B, tb) == tb and B > sub:          # would be a single-step grid
        tb = max(sub, _round_up((B + 1) // 2, sub))
    return tb


def _mlp_kernel(head_slices, x_ref, w1_ref, b1_ref, w2_ref, b2_ref,
                wh_ref, bh_ref, out_ref):
    """Fused forward on one (TB, K) batch tile.

    Three lane-dense MXU matmuls; value + all action heads share one fused
    weight matrix.  Elementwise math stays in f32.  Single lane-dense store.
    """
    mxu_dtype = w1_ref.dtype
    x = x_ref[...].astype(mxu_dtype)         # f32 -> MXU dtype cast on the VPU

    # affine1 + tanh                          -> (TB, Hp), f32
    h1 = jnp.tanh(
        jnp.dot(x, w1_ref[...], preferred_element_type=jnp.float32)
        + b1_ref[...])

    # tanh(affine2(h1) + h1)   (residual add in f32)
    h = jnp.tanh(
        jnp.dot(h1.astype(mxu_dtype), w2_ref[...],
                preferred_element_type=jnp.float32)
        + b2_ref[...] + h1)

    # fused value + action heads: one matmul -> lane-dense (TB, Op) slab
    logits = (jnp.dot(h.astype(mxu_dtype), wh_ref[...],
                      preferred_element_type=jnp.float32)
              + bh_ref[...])

    col = jax.lax.broadcasted_iota(jnp.int32, logits.shape, dimension=1)

    # Pass 1: per-head row maxes scattered into one full-width max slab.
    # Non-head columns (value col 0 + lane padding) keep m_slab = logits so
    # exp(logits - m_slab) = 1 there (finite, unused).
    m_slab = logits
    masks, maxes = [], []
    for off, size in head_slices:
        in_head = (col >= off) & (col < off + size)
        masked = jnp.where(in_head, logits, -jnp.inf)
        m = jnp.max(masked, axis=-1, keepdims=True)
        m_slab = jnp.where(in_head, m, m_slab)
        masks.append(in_head)
        maxes.append(m)

    # Single EUP exp pass over the whole slab (instead of once per head).
    p = jnp.exp(logits - m_slab)

    # Pass 2: per-head masked sum + log -> correction slab (disjoint ranges).
    correction = jnp.zeros_like(logits)
    for in_head, m in zip(masks, maxes):
        s = jnp.sum(jnp.where(in_head, p, 0.0), axis=-1, keepdims=True)
        lse = m + jnp.log(s)
        correction = jnp.where(in_head, lse, correction)

    # column 0 (value) and padding columns have correction 0 -> pass through.
    out_ref[...] = logits - correction


def pack_params(params, num_inputs, hid_size, naction_heads,
                mxu_dtype=jnp.float32):
    """One-time packing (NOT per call): transpose PyTorch [out,in] weights to
    [in,out], zero-pad hidden/output dims to lane width, fuse value + action
    head weights/biases into a single matrix / bias row."""
    H = hid_size
    Hp = _round_up(H, _LANE)
    n_out = 1 + sum(naction_heads)
    Op = _round_up(n_out, _LANE)

    def pad2(a, rows, cols):
        return jnp.pad(a, ((0, rows - a.shape[0]), (0, cols - a.shape[1])))

    w1 = pad2(params["w1"].T, num_inputs, Hp).astype(mxu_dtype)
    b1 = pad2(params["b1"][None, :], 1, Hp).astype(jnp.float32)
    w2 = pad2(params["w2"].T, Hp, Hp).astype(mxu_dtype)   # padded rows/cols = 0
    b2 = pad2(params["b2"][None, :], 1, Hp).astype(jnp.float32)

    wh = jnp.concatenate(
        [params["wv"].T] +
        [params[f"wh{i}"].T for i in range(len(naction_heads))], axis=1)
    bh = jnp.concatenate(
        [params["bv"]] +
        [params[f"bh{i}"] for i in range(len(naction_heads))], axis=0)[None, :]
    wh = pad2(wh, Hp, Op).astype(mxu_dtype)
    bh = pad2(bh, 1, Op).astype(jnp.float32)

    head_slices, off = [], 1          # column 0 is the value head
    for o in naction_heads:
        head_slices.append((off, o))
        off += o

    return dict(w1=w1, b1=b1, w2=w2, b2=b2, wh=wh, bh=bh,
                Hp=Hp, Op=Op, head_slices=tuple(head_slices),
                mxu_dtype=mxu_dtype)


def _mlp_forward_impl(x, packed, naction_heads, batch_tile,
                      single_buffer_weights):
    B, K = x.shape
    Hp, Op = packed["Hp"], packed["Op"]
    head_slices = packed["head_slices"]
    mxu_dtype = jnp.dtype(packed["mxu_dtype"])

    # Sublane multiple depends on MXU dtype packing (8 f32, 16 bf16 rows).
    sub = _SUBLANE_F32 * (4 // mxu_dtype.itemsize)
    TB = _choose_batch_tile(B, batch_tile, sub)
    Bp = _round_up(B, TB)
    # x stays f32 (cast to MXU dtype inside the kernel); pad only if needed.
    xp = x if Bp == B else jnp.pad(x, ((0, Bp - B), (0, 0)))

    weight_keys = ("w1", "b1", "w2", "b2", "wh", "bh")
    weight_bytes = sum(int(packed[k].size) * packed[k].dtype.itemsize
                       for k in weight_keys)
    wbufs = 1 if single_buffer_weights else 2
    stream_bytes = 2 * (TB * K + TB * Op) * 4      # double-buffered x + out (f32)
    vmem_limit = int(min(max(wbufs * weight_bytes + stream_bytes + (2 << 20),
                             32 << 20), 128 << 20))

    flops = 2 * Bp * (K * Hp + Hp * Hp + Hp * Op)
    transcendentals = Bp * (2 * Hp + Op + len(head_slices))
    bytes_accessed = weight_bytes + Bp * (K + Op) * 4

    if single_buffer_weights:
        def wspec(shape):
            # Invariant operands: keep a single VMEM copy (no double buffering).
            return pl.BlockSpec(shape, lambda i: (0, 0),
                                pipeline_mode=pl.Buffered(1))
    else:
        def wspec(shape):
            return pl.BlockSpec(shape, lambda i: (0, 0))

    grid_spec = pltpu.PrefetchScalarGridSpec(
        num_scalar_prefetch=0,
        grid=(Bp // TB,),
        in_specs=[
            pl.BlockSpec((TB, K), lambda i: (i, 0)),      # x: streamed over batch
            wspec((K, Hp)),                               # weights: VMEM-resident
            wspec((1, Hp)),
            wspec((Hp, Hp)),
            wspec((1, Hp)),
            wspec((Hp, Op)),
            wspec((1, Op)),
        ],
        out_specs=pl.BlockSpec((TB, Op), lambda i: (i, 0)),
    )

    slab = pl.pallas_call(
        functools.partial(_mlp_kernel, head_slices),
        out_shape=jax.ShapeDtypeStruct((Bp, Op), jnp.float32),
        grid_spec=grid_spec,
        compiler_params=pltpu.CompilerParams(
            dimension_semantics=("parallel",),
            vmem_limit_bytes=vmem_limit),
        cost_estimate=pl.CostEstimate(
            flops=flops, transcendentals=transcendentals,
            bytes_accessed=bytes_accessed),
    )(xp, packed["w1"], packed["b1"], packed["w2"], packed["b2"],
      packed["wh"], packed["bh"])

    v = slab[:B, 0:1]
    logps = [slab[:B, off:off + o] for off, o in head_slices]
    return logps, v


def mlp_forward(x, packed, naction_heads, batch_tile=512,
                single_buffer_weights=True):
    """Runs the fused MLP forward; returns ([logp_head_i...], v)."""
    try:
        return _mlp_forward_impl(x, packed, naction_heads, batch_tile,
                                 single_buffer_weights)
    except Exception:
        if not single_buffer_weights:
            raise
        # Fallback if this JAX build rejects pipeline_mode=pl.Buffered(1).
        return _mlp_forward_impl(x, packed, naction_heads, batch_tile, False)


def init_params(key, num_inputs, hid_size, naction_heads):
    """Deterministic synthetic params in PyTorch nn.Linear layout
    (weight: [out, in], bias: [out])."""
    keys = jax.random.split(key, 6 + 2 * len(naction_heads))
    p = {}
    p["w1"] = jax.random.normal(keys[0], (hid_size, num_inputs), jnp.float32) * 0.1
    p["b1"] = jax.random.normal(keys[1], (hid_size,), jnp.float32) * 0.1
    p["w2"] = jax.random.normal(keys[2], (hid_size, hid_size), jnp.float32) * 0.1
    p["b2"] = jax.random.normal(keys[3], (hid_size,), jnp.float32) * 0.1
    p["wv"] = jax.random.normal(keys[4], (1, hid_size), jnp.float32) * 0.1
    p["bv"] = jax.random.normal(keys[5], (1,), jnp.float32) * 0.1
    for i, o in enumerate(naction_heads):
        p[f"wh{i}"] = jax.random.normal(keys[6 + 2 * i], (o, hid_size), jnp.float32) * 0.1
        p[f"bh{i}"] = jax.random.normal(keys[7 + 2 * i], (o,), jnp.float32) * 0.1
    return p


def reference_forward(x, params, naction_heads):
    """Pure-JAX reference (PyTorch Linear semantics: y = x @ W.T + b)."""
    h1 = jnp.tanh(x @ params["w1"].T + params["b1"])
    h = jnp.tanh(h1 @ params["w2"].T + params["b2"] + h1)
    v = h @ params["wv"].T + params["bv"]
    logps = []
    for i in range(len(naction_heads)):
        logits = h @ params[f"wh{i}"].T + params[f"bh{i}"]
        logps.append(jax.nn.log_softmax(logits, axis=-1))
    return logps, v


def _check(logps, v, ref_logps, ref_v, atol, tag):
    jax.block_until_ready(v)
    for lp in logps:
        jax.block_until_ready(lp)
    assert jnp.allclose(v, ref_v, atol=atol), f"value head mismatch ({tag})"
    for lp, rlp in zip(logps, ref_logps):
        assert jnp.allclose(lp, rlp, atol=atol), f"log_softmax mismatch ({tag})"


if __name__ == "__main__":
    num_inputs = 16
    hid_size = 32
    naction_heads = (5, 7)

    key = jax.random.PRNGKey(0)
    kx, kx2, kp = jax.random.split(key, 3)
    params = init_params(kp, num_inputs, hid_size, naction_heads)

    # --- small batch (single grid step) ----------------------------------
    x = jax.random.normal(kx, (4, num_inputs), jnp.float32)
    ref_logps, ref_v = reference_forward(x, params, naction_heads)

    # f32 MXU path (tight tolerance)
    packed32 = pack_params(params, num_inputs, hid_size, naction_heads,
                           mxu_dtype=jnp.float32)
    logps, v = mlp_forward(x, packed32, naction_heads)
    _check(logps, v, ref_logps, ref_v, 1e-5, "f32")

    # bf16 MXU-input path (valid on v5e/v6e/v7x); elementwise math stays f32.
    packed16 = pack_params(params, num_inputs, hid_size, naction_heads,
                           mxu_dtype=jnp.bfloat16)
    logps16, v16 = mlp_forward(x, packed16, naction_heads)
    _check(logps16, v16, ref_logps, ref_v, 5e-2, "bf16")

    # --- larger batch (exercises padding + the >=2-step megacore grid) ----
    x2 = jax.random.normal(kx2, (20, num_inputs), jnp.float32)
    ref_logps2, ref_v2 = reference_forward(x2, params, naction_heads)
    logps2, v2 = mlp_forward(x2, packed32, naction_heads)
    _check(logps2, v2, ref_logps2, ref_v2, 1e-5, "f32/multi-step")

    print("KERNEL_OK")
</pallas_src>

<mosaic_0001>
module attributes {stable_mosaic.version = 11 : i64} {
  func.func @_mlp_kernel(%arg0: i32, %arg1: memref<8x16xf32, #tpu.memory_space<vmem>>, %arg2: memref<16x128xf32, #tpu.memory_space<vmem>>, %arg3: memref<1x128xf32, #tpu.memory_space<vmem>>, %arg4: memref<128x128xf32, #tpu.memory_space<vmem>>, %arg5: memref<1x128xf32, #tpu.memory_space<vmem>>, %arg6: memref<128x128xf32, #tpu.memory_space<vmem>>, %arg7: memref<1x128xf32, #tpu.memory_space<vmem>>, %arg8: memref<8x128xf32, #tpu.memory_space<vmem>>) attributes {dimension_semantics = [#tpu.dimension_semantics<parallel>], iteration_bounds = array<i64: 1>, scalar_prefetch = 0 : i64, scratch_operands = 0 : i64, tpu.core_type = #tpu.core_type<tc>, window_params = [{transform_indices = @transform_0, window_bounds = array<i64: 8, 16>}, {pipeline_mode = #tpu.pipeline_mode<synchronous>, transform_indices = @transform_1, window_bounds = array<i64: 16, 128>}, {pipeline_mode = #tpu.pipeline_mode<synchronous>, transform_indices = @transform_2, window_bounds = array<i64: 1, 128>}, {pipeline_mode = #tpu.pipeline_mode<synchronous>, transform_indices = @transform_3, window_bounds = array<i64: 128, 128>}, {pipeline_mode = #tpu.pipeline_mode<synchronous>, transform_indices = @transform_4, window_bounds = array<i64: 1, 128>}, {pipeline_mode = #tpu.pipeline_mode<synchronous>, transform_indices = @transform_5, window_bounds = array<i64: 128, 128>}, {pipeline_mode = #tpu.pipeline_mode<synchronous>, transform_indices = @transform_6, window_bounds = array<i64: 1, 128>}, {transform_indices = @transform_7, window_bounds = array<i64: 8, 128>}]} {
    %c0 = arith.constant 0 : index
    %c0_0 = arith.constant 0 : index
    %0 = vector.load %arg1[%c0, %c0_0] : memref<8x16xf32, #tpu.memory_space<vmem>>, vector<8x16xf32>
    %c0_1 = arith.constant 0 : index
    %c0_2 = arith.constant 0 : index
    %1 = vector.load %arg2[%c0_1, %c0_2] : memref<16x128xf32, #tpu.memory_space<vmem>>, vector<16x128xf32>
    %cst = arith.constant dense<0.000000e+00> : vector<8x128xf32>
    %2 = tpu.matmul %0, %1, %cst {dimension_numbers = #tpu.dot_dimension_numbers<[1], [0], [0], [1], [0, 0, 1, 1], [], []>} : vector<8x16xf32>, vector<16x128xf32>, vector<8x128xf32> -> vector<8x128xf32>
    %c0_3 = arith.constant 0 : index
    %c0_4 = arith.constant 0 : index
    %3 = vector.load %arg3[%c0_3, %c0_4] : memref<1x128xf32, #tpu.memory_space<vmem>>, vector<1x128xf32>
    %4 = vector.broadcast %3 : vector<1x128xf32> to vector<8x128xf32>
    %5 = arith.addf %2, %4 : vector<8x128xf32>
    %6 = math.tanh %5 : vector<8x128xf32>
    %c0_5 = arith.constant 0 : index
    %c0_6 = arith.constant 0 : index
    %7 = vector.load %arg4[%c0_5, %c0_6] : memref<128x128xf32, #tpu.memory_space<vmem>>, vector<128x128xf32>
    %cst_7 = arith.constant dense<0.000000e+00> : vector<8x128xf32>
    %8 = tpu.matmul %6, %7, %cst_7 {dimension_numbers = #tpu.dot_dimension_numbers<[1], [0], [0], [1], [0, 0, 1, 1], [], []>} : vector<8x128xf32>, vector<128x128xf32>, vector<8x128xf32> -> vector<8x128xf32>
    %c0_8 = arith.constant 0 : index
    %c0_9 = arith.constant 0 : index
    %9 = vector.load %arg5[%c0_8, %c0_9] : memref<1x128xf32, #tpu.memory_space<vmem>>, vector<1x128xf32>
    %10 = vector.broadcast %9 : vector<1x128xf32> to vector<8x128xf32>
    %11 = arith.addf %8, %10 : vector<8x128xf32>
    %12 = arith.addf %11, %6 : vector<8x128xf32>
    %13 = math.tanh %12 : vector<8x128xf32>
    %c0_10 = arith.constant 0 : index
    %c0_11 = arith.constant 0 : index
    %14 = vector.load %arg6[%c0_10, %c0_11] : memref<128x128xf32, #tpu.memory_space<vmem>>, vector<128x128xf32>
    %cst_12 = arith.constant dense<0.000000e+00> : vector<8x128xf32>
    %15 = tpu.matmul %13, %14, %cst_12 {dimension_numbers = #tpu.dot_dimension_numbers<[1], [0], [0], [1], [0, 0, 1, 1], [], []>} : vector<8x128xf32>, vector<128x128xf32>, vector<8x128xf32> -> vector<8x128xf32>
    %c0_13 = arith.constant 0 : index
    %c0_14 = arith.constant 0 : index
    %16 = vector.load %arg7[%c0_13, %c0_14] : memref<1x128xf32, #tpu.memory_space<vmem>>, vector<1x128xf32>
    %17 = vector.broadcast %16 : vector<1x128xf32> to vector<8x128xf32>
    %18 = arith.addf %15, %17 : vector<8x128xf32>
    %19 = tpu.iota {dimensions = array<i32: 1>} : vector<8x128xi32>
    %c1_i32 = arith.constant 1 : i32
    %20 = vector.broadcast %c1_i32 : i32 to vector<8x128xi32>
    %21 = arith.cmpi sge, %19, %20 : vector<8x128xi32>
    %c6_i32 = arith.constant 6 : i32
    %22 = vector.broadcast %c6_i32 : i32 to vector<8x128xi32>
    %23 = arith.cmpi slt, %19, %22 : vector<8x128xi32>
    %24 = arith.andi %21, %23 : vector<8x128xi1>
    %cst_15 = arith.constant 0xFF800000 : f32
    %25 = vector.broadcast %cst_15 : f32 to vector<8x128xf32>
    %26 = arith.select %24, %18, %25 : vector<8x128xi1>, vector<8x128xf32>
    %cst_16 = arith.constant dense<0xFF800000> : vector<8xf32>
    %27 = vector.multi_reduction <maximumf>, %26, %cst_16 [1] : vector<8x128xf32> to vector<8xf32>
    %28 = vector.shape_cast %27 : vector<8xf32> to vector<8x1xf32>
    %29 = vector.shape_cast %28 : vector<8x1xf32> to vector<8x1xf32>
    %30 = vector.broadcast %29 : vector<8x1xf32> to vector<8x128xf32>
    %31 = arith.select %24, %30, %18 : vector<8x128xi1>, vector<8x128xf32>
    %c6_i32_17 = arith.constant 6 : i32
    %32 = vector.broadcast %c6_i32_17 : i32 to vector<8x128xi32>
    %33 = arith.cmpi sge, %19, %32 : vector<8x128xi32>
    %c13_i32 = arith.constant 13 : i32
    %34 = vector.broadcast %c13_i32 : i32 to vector<8x128xi32>
    %35 = arith.cmpi slt, %19, %34 : vector<8x128xi32>
    %36 = arith.andi %33, %35 : vector<8x128xi1>
    %cst_18 = arith.constant 0xFF800000 : f32
    %37 = vector.broadcast %cst_18 : f32 to vector<8x128xf32>
    %38 = arith.select %36, %18, %37 : vector<8x128xi1>, vector<8x128xf32>
    %cst_19 = arith.constant dense<0xFF800000> : vector<8xf32>
    %39 = vector.multi_reduction <maximumf>, %38, %cst_19 [1] : vector<8x128xf32> to vector<8xf32>
    %40 = vector.shape_cast %39 : vector<8xf32> to vector<8x1xf32>
    %41 = vector.shape_cast %40 : vector<8x1xf32> to vector<8x1xf32>
    %42 = vector.broadcast %41 : vector<8x1xf32> to vector<8x128xf32>
    %43 = arith.select %36, %42, %31 : vector<8x128xi1>, vector<8x128xf32>
    %44 = arith.subf %18, %43 : vector<8x128xf32>
    %45 = math.exp %44 : vector<8x128xf32>
    %cst_20 = arith.constant 0.000000e+00 : f32
    %46 = vector.broadcast %cst_20 : f32 to vector<8x128xf32>
    %cst_21 = arith.constant 0.000000e+00 : f32
    %47 = vector.broadcast %cst_21 : f32 to vector<8x128xf32>
    %48 = arith.select %24, %45, %47 : vector<8x128xi1>, vector<8x128xf32>
    %cst_22 = arith.constant dense<0.000000e+00> : vector<8xf32>
    %49 = vector.multi_reduction <add>, %48, %cst_22 [1] : vector<8x128xf32> to vector<8xf32>
    %50 = vector.shape_cast %49 : vector<8xf32> to vector<8x1xf32>
    %51 = math.log %50 : vector<8x1xf32>
    %52 = arith.addf %28, %51 : vector<8x1xf32>
    %53 = vector.shape_cast %52 : vector<8x1xf32> to vector<8x1xf32>
    %54 = vector.broadcast %53 : vector<8x1xf32> to vector<8x128xf32>
    %55 = arith.select %24, %54, %46 : vector<8x128xi1>, vector<8x128xf32>
    %cst_23 = arith.constant 0.000000e+00 : f32
    %56 = vector.broadcast %cst_23 : f32 to vector<8x128xf32>
    %57 = arith.select %36, %45, %56 : vector<8x128xi1>, vector<8x128xf32>
    %cst_24 = arith.constant dense<0.000000e+00> : vector<8xf32>
    %58 = vector.multi_reduction <add>, %57, %cst_24 [1] : vector<8x128xf32> to vector<8xf32>
    %59 = vector.shape_cast %58 : vector<8xf32> to vector<8x1xf32>
    %60 = math.log %59 : vector<8x1xf32>
    %61 = arith.addf %40, %60 : vector<8x1xf32>
    %62 = vector.shape_cast %61 : vector<8x1xf32> to vector<8x1xf32>
    %63 = vector.broadcast %62 : vector<8x1xf32> to vector<8x128xf32>
    %64 = arith.select %36, %63, %55 : vector<8x128xi1>, vector<8x128xf32>
    %65 = arith.subf %18, %64 : vector<8x128xf32>
    %c0_25 = arith.constant 0 : index
    %c0_26 = arith.constant 0 : index
    %66 = vector.load %arg8[%c0_25, %c0_26] : memref<8x128xf32, #tpu.memory_space<vmem>>, vector<8x128xf32>
    tpu.vector_store %arg8[%c0_25, %c0_26], %65 {strides = array<i32>} : memref<8x128xf32, #tpu.memory_space<vmem>>, vector<8x128xf32>,
    return
  }
  func.func @transform_0(%arg0: i32) -> (i32, i32) {
    %c0_i32 = arith.constant 0 : i32
    %c0_i32_0 = arith.constant 0 : i32
    return %arg0, %c0_i32 : i32, i32
  }
  func.func @transform_1(%arg0: i32) -> (i32, i32) {
    %c0_i32 = arith.constant 0 : i32
    %c0_i32_0 = arith.constant 0 : i32
    %c0_i32_1 = arith.constant 0 : i32
    return %c0_i32, %c0_i32_0 : i32, i32
  }
  func.func @transform_2(%arg0: i32) -> (i32, i32) {
    %c0_i32 = arith.constant 0 : i32
    %c0_i32_0 = arith.constant 0 : i32
    %c0_i32_1 = arith.constant 0 : i32
    return %c0_i32, %c0_i32_0 : i32, i32
  }
  func.func @transform_3(%arg0: i32) -> (i32, i32) {
    %c0_i32 = arith.constant 0 : i32
    %c0_i32_0 = arith.constant 0 : i32
    %c0_i32_1 = arith.constant 0 : i32
    return %c0_i32, %c0_i32_0 : i32, i32
  }
  func.func @transform_4(%arg0: i32) -> (i32, i32) {
    %c0_i32 = arith.constant 0 : i32
    %c0_i32_0 = arith.constant 0 : i32
    %c0_i32_1 = arith.constant 0 : i32
    return %c0_i32, %c0_i32_0 : i32, i32
  }
  func.func @transform_5(%arg0: i32) -> (i32, i32) {
    %c0_i32 = arith.constant 0 : i32
    %c0_i32_0 = arith.constant 0 : i32
    %c0_i32_1 = arith.constant 0 : i32
    return %c0_i32, %c0_i32_0 : i32, i32
  }
  func.func @transform_6(%arg0: i32) -> (i32, i32) {
    %c0_i32 = arith.constant 0 : i32
    %c0_i32_0 = arith.constant 0 : i32
    %c0_i32_1 = arith.constant 0 : i32
    return %c0_i32, %c0_i32_0 : i32, i32
  }
  func.func @transform_7(%arg0: i32) -> (i32, i32) {
    %c0_i32 = arith.constant 0 : i32
    %c0_i32_0 = arith.constant 0 : i32
    return %arg0, %c0_i32 : i32, i32
  }
}

module attributes {stable_mosaic.version = 11 : i64} {
  func.func @_mlp_kernel(%arg0: i32, %arg1: memref<8x16xf32, #tpu.memory_space<vmem>>, %arg2: memref<16x128xf32, #tpu.memory_space<vmem>>, %arg3: memref<1x128xf32, #tpu.memory_space<vmem>>, %arg4: memref<128x128xf32, #tpu.memory_space<vmem>>, %arg5: memref<1x128xf32, #tpu.memory_space<vmem>>, %arg6: memref<128x128xf32, #tpu.memory_space<vmem>>, %arg7: memref<1x128xf32, #tpu.memory_space<vmem>>, %arg8: memref<8x128xf32, #tpu.memory_space<vmem>>) attributes {dimension_semantics = [#tpu.dimension_semantics<parallel>], iteration_bounds = array<i64: 1>, scalar_prefetch = 0 : i64, scratch_operands = 0 : i64, tpu.core_type = #tpu.core_type<tc>, window_params = [{transform_indices = @transform_0, window_bounds = array<i64: 8, 16>}, {pipeline_mode = #tpu.pipeline_mode<synchronous>, transform_indices = @transform_1, window_bounds = array<i64: 16, 128>}, {pipeline_mode = #tpu.pipeline_mode<synchronous>, transform_indices = @transform_2, window_bounds = array<i64: 1, 128>}, {pipeline_mode = #tpu.pipeline_mode<synchronous>, transform_indices = @transform_3, window_bounds = array<i64: 128, 128>}, {pipeline_mode = #tpu.pipeline_mode<synchronous>, transform_indices = @transform_4, window_bounds = array<i64: 1, 128>}, {pipeline_mode = #tpu.pipeline_mode<synchronous>, transform_indices = @transform_5, window_bounds = array<i64: 128, 128>}, {pipeline_mode = #tpu.pipeline_mode<synchronous>, transform_indices = @transform_6, window_bounds = array<i64: 1, 128>}, {transform_indices = @transform_7, window_bounds = array<i64: 8, 128>}]} {
    %c0 = arith.constant 0 : index
    %c0_0 = arith.constant 0 : index
    %0 = vector.load %arg1[%c0, %c0_0] : memref<8x16xf32, #tpu.memory_space<vmem>>, vector<8x16xf32>
    %c0_1 = arith.constant 0 : index
    %c0_2 = arith.constant 0 : index
    %1 = vector.load %arg2[%c0_1, %c0_2] : memref<16x128xf32, #tpu.memory_space<vmem>>, vector<16x128xf32>
    %cst = arith.constant dense<0.000000e+00> : vector<8x128xf32>
    %2 = tpu.matmul %0, %1, %cst {dimension_numbers = #tpu.dot_dimension_numbers<[1], [0], [0], [1], [0, 0, 1, 1], [], []>} : vector<8x16xf32>, vector<16x128xf32>, vector<8x128xf32> -> vector<8x128xf32>
    %c0_3 = arith.constant 0 : index
    %c0_4 = arith.constant 0 : index
    %3 = vector.load %arg3[%c0_3, %c0_4] : memref<1x128xf32, #tpu.memory_space<vmem>>, vector<1x128xf32>
    %4 = vector.broadcast %3 : vector<1x128xf32> to vector<8x128xf32>
    %5 = arith.addf %2, %4 : vector<8x128xf32>
    %6 = math.tanh %5 : vector<8x128xf32>
    %c0_5 = arith.constant 0 : index
    %c0_6 = arith.constant 0 : index
    %7 = vector.load %arg4[%c0_5, %c0_6] : memref<128x128xf32, #tpu.memory_space<vmem>>, vector<128x128xf32>
    %cst_7 = arith.constant dense<0.000000e+00> : vector<8x128xf32>
    %8 = tpu.matmul %6, %7, %cst_7 {dimension_numbers = #tpu.dot_dimension_numbers<[1], [0], [0], [1], [0, 0, 1, 1], [], []>} : vector<8x128xf32>, vector<128x128xf32>, vector<8x128xf32> -> vector<8x128xf32>
    %c0_8 = arith.constant 0 : index
    %c0_9 = arith.constant 0 : index
    %9 = vector.load %arg5[%c0_8, %c0_9] : memref<1x128xf32, #tpu.memory_space<vmem>>, vector<1x128xf32>
    %10 = vector.broadcast %9 : vector<1x128xf32> to vector<8x128xf32>
    %11 = arith.addf %8, %10 : vector<8x128xf32>
    %12 = arith.addf %11, %6 : vector<8x128xf32>
    %13 = math.tanh %12 : vector<8x128xf32>
    %c0_10 = arith.constant 0 : index
    %c0_11 = arith.constant 0 : index
    %14 = vector.load %arg6[%c0_10, %c0_11] : memref<128x128xf32, #tpu.memory_space<vmem>>, vector<128x128xf32>
    %cst_12 = arith.constant dense<0.000000e+00> : vector<8x128xf32>
    %15 = tpu.matmul %13, %14, %cst_12 {dimension_numbers = #tpu.dot_dimension_numbers<[1], [0], [0], [1], [0, 0, 1, 1], [], []>} : vector<8x128xf32>, vector<128x128xf32>, vector<8x128xf32> -> vector<8x128xf32>
    %c0_13 = arith.constant 0 : index
    %c0_14 = arith.constant 0 : index
    %16 = vector.load %arg7[%c0_13, %c0_14] : memref<1x128xf32, #tpu.memory_space<vmem>>, vector<1x128xf32>
    %17 = vector.broadcast %16 : vector<1x128xf32> to vector<8x128xf32>
    %18 = arith.addf %15, %17 : vector<8x128xf32>
    %19 = tpu.iota {dimensions = array<i32: 1>} : vector<8x128xi32>
    %c1_i32 = arith.constant 1 : i32
    %20 = vector.broadcast %c1_i32 : i32 to vector<8x128xi32>
    %21 = arith.cmpi sge, %19, %20 : vector<8x128xi32>
    %c6_i32 = arith.constant 6 : i32
    %22 = vector.broadcast %c6_i32 : i32 to vector<8x128xi32>
    %23 = arith.cmpi slt, %19, %22 : vector<8x128xi32>
    %24 = arith.andi %21, %23 : vector<8x128xi1>
    %cst_15 = arith.constant 0xFF800000 : f32
    %25 = vector.broadcast %cst_15 : f32 to vector<8x128xf32>
    %26 = arith.select %24, %18, %25 : vector<8x128xi1>, vector<8x128xf32>
    %cst_16 = arith.constant dense<0xFF800000> : vector<8xf32>
    %27 = vector.multi_reduction <maximumf>, %26, %cst_16 [1] : vector<8x128xf32> to vector<8xf32>
    %28 = vector.shape_cast %27 : vector<8xf32> to vector<8x1xf32>
    %29 = vector.shape_cast %28 : vector<8x1xf32> to vector<8x1xf32>
    %30 = vector.broadcast %29 : vector<8x1xf32> to vector<8x128xf32>
    %31 = arith.select %24, %30, %18 : vector<8x128xi1>, vector<8x128xf32>
    %c6_i32_17 = arith.constant 6 : i32
    %32 = vector.broadcast %c6_i32_17 : i32 to vector<8x128xi32>
    %33 = arith.cmpi sge, %19, %32 : vector<8x128xi32>
    %c13_i32 = arith.constant 13 : i32
    %34 = vector.broadcast %c13_i32 : i32 to vector<8x128xi32>
    %35 = arith.cmpi slt, %19, %34 : vector<8x128xi32>
    %36 = arith.andi %33, %35 : vector<8x128xi1>
    %cst_18 = arith.constant 0xFF800000 : f32
    %37 = vector.broadcast %cst_18 : f32 to vector<8x128xf32>
    %38 = arith.select %36, %18, %37 : vector<8x128xi1>, vector<8x128xf32>
    %cst_19 = arith.constant dense<0xFF800000> : vector<8xf32>
    %39 = vector.multi_reduction <maximumf>, %38, %cst_19 [1] : vector<8x128xf32> to vector<8xf32>
    %40 = vector.shape_cast %39 : vector<8xf32> to vector<8x1xf32>
    %41 = vector.shape_cast %40 : vector<8x1xf32> to vector<8x1xf32>
    %42 = vector.broadcast %41 : vector<8x1xf32> to vector<8x128xf32>
    %43 = arith.select %36, %42, %31 : vector<8x128xi1>, vector<8x128xf32>
    %44 = arith.subf %18, %43 : vector<8x128xf32>
    %45 = math.exp %44 : vector<8x128xf32>
    %cst_20 = arith.constant 0.000000e+00 : f32
    %46 = vector.broadcast %cst_20 : f32 to vector<8x128xf32>
    %cst_21 = arith.constant 0.000000e+00 : f32
    %47 = vector.broadcast %cst_21 : f32 to vector<8x128xf32>
    %48 = arith.select %24, %45, %47 : vector<8x128xi1>, vector<8x128xf32>
    %cst_22 = arith.constant dense<0.000000e+00> : vector<8xf32>
    %49 = vector.multi_reduction <add>, %48, %cst_22 [1] : vector<8x128xf32> to vector<8xf32>
    %50 = vector.shape_cast %49 : vector<8xf32> to vector<8x1xf32>
    %51 = math.log %50 : vector<8x1xf32>
    %52 = arith.addf %28, %51 : vector<8x1xf32>
    %53 = vector.shape_cast %52 : vector<8x1xf32> to vector<8x1xf32>
    %54 = vector.broadcast %53 : vector<8x1xf32> to vector<8x128xf32>
    %55 = arith.select %24, %54, %46 : vector<8x128xi1>, vector<8x128xf32>
    %cst_23 = arith.constant 0.000000e+00 : f32
    %56 = vector.broadcast %cst_23 : f32 to vector<8x128xf32>
    %57 = arith.select %36, %45, %56 : vector<8x128xi1>, vector<8x128xf32>
    %cst_24 = arith.constant dense<0.000000e+00> : vector<8xf32>
    %58 = vector.multi_reduction <add>, %57, %cst_24 [1] : vector<8x128xf32> to vector<8xf32>
    %59 = vector.shape_cast %58 : vector<8xf32> to vector<8x1xf32>
    %60 = math.log %59 : vector<8x1xf32>
    %61 = arith.addf %40, %60 : vector<8x1xf32>
    %62 = vector.shape_cast %61 : vector<8x1xf32> to vector<8x1xf32>
    %63 = vector.broadcast %62 : vector<8x1xf32> to vector<8x128xf32>
    %64 = arith.select %36, %63, %55 : vector<8x128xi1>, vector<8x128xf32>
    %65 = arith.subf %18, %64 : vector<8x128xf32>
    %c0_25 = arith.constant 0 : index
    %c0_26 = arith.constant 0 : index
    %66 = vector.load %arg8[%c0_25, %c0_26] : memref<8x128xf32, #tpu.memory_space<vmem>>, vector<8x128xf32>
    tpu.vector_store %arg8[%c0_25, %c0_26], %65 {strides = array<i32>} : memref<8x128xf32, #tpu.memory_space<vmem>>, vector<8x128xf32>,
    return
  }
  func.func @transform_0(%arg0: i32) -> (i32, i32) {
    %c0_i32 = arith.constant 0 : i32
    %c0_i32_0 = arith.constant 0 : i32
    return %arg0, %c0_i32 : i32, i32
  }
  func.func @transform_1(%arg0: i32) -> (i32, i32) {
    %c0_i32 = arith.constant 0 : i32
    %c0_i32_0 = arith.constant 0 : i32
    %c0_i32_1 = arith.constant 0 : i32
    return %c0_i32, %c0_i32_0 : i32, i32
  }
  func.func @transform_2(%arg0: i32) -> (i32, i32) {
    %c0_i32 = arith.constant 0 : i32
    %c0_i32_0 = arith.constant 0 : i32
    %c0_i32_1 = arith.constant 0 : i32
    return %c0_i32, %c0_i32_0 : i32, i32
  }
  func.func @transform_3(%arg0: i32) -> (i32, i32) {
    %c0_i32 = arith.constant 0 : i32
    %c0_i32_0 = arith.constant 0 : i32
    %c0_i32_1 = arith.constant 0 : i32
    return %c0_i32, %c0_i32_0 : i32, i32
  }
  func.func @transform_4(%arg0: i32) -> (i32, i32) {
    %c0_i32 = arith.constant 0 : i32
    %c0_i32_0 = arith.constant 0 : i32
    %c0_i32_1 = arith.constant 0 : i32
    return %c0_i32, %c0_i32_0 : i32, i32
  }
  func.func @transform_5(%arg0: i32) -> (i32, i32) {
    %c0_i32 = arith.constant 0 : i32
    %c0_i32_0 = arith.constant 0 : i32
    %c0_i32_1 = arith.constant 0 : i32
    return %c0_i32, %c0_i32_0 : i32, i32
  }
  func.func @transform_6(%arg0: i32) -> (i32, i32) {
    %c0_i32 = arith.constant 0 : i32
    %c0_i32_0 = arith.constant 0 : i32
    %c0_i32_1 = arith.constant 0 : i32
    return %c0_i32, %c0_i32_0 : i32, i32
  }
  func.func @transform_7(%arg0: i32) -> (i32, i32) {
    %c0_i32 = arith.constant 0 : i32
    %c0_i32_0 = arith.constant 0 : i32
    return %arg0, %c0_i32 : i32, i32
  }
}

</mosaic_0001>

<llo_original>
// kernel: tpu_custom_call.1
$region0: #{tpu_custom_call.1}
  #allocation0 [shape = 'u32[]', space=smem, size = 0x4, offset = 0x4, fixed_abs, tag = 'smem constant byte address 0x4 - core index']
  #allocation1 [shape = 'u32[144,128]{1,0:T(1,128)}', space=vmem, size = 0x12000, scoped, tag = 'internal scratch']
  %s0 = inlined_call_operand.hbm [shape: f32[8,16], index: 0, kind: input, shape index: {}]
  %s1 = inlined_call_operand.hbm [shape: f32[16,128], index: 1, kind: input, shape index: {}]
  %s2 = inlined_call_operand.vmem [shape: f32[1,128], index: 2, kind: input, shape index: {}]
  %s3 = inlined_call_operand.hbm [shape: f32[128,128], index: 3, kind: input, shape index: {}]
  %s4 = inlined_call_operand.vmem [shape: f32[1,128], index: 4, kind: input, shape index: {}]
  %s5 = inlined_call_operand.hbm [shape: f32[128,128], index: 5, kind: input, shape index: {}]
  %s6 = inlined_call_operand.vmem [shape: f32[1,128], index: 6, kind: input, shape index: {}]
  %s7 = inlined_call_operand.hbm [shape: f32[8,128], index: 7, kind: output, shape index: {}]
  %s8 = sld [smem:[#allocation0]]
  $region54: #{tpu_custom_call.1} parent=0
    _
  %s10 = ssub.s32 1, %s8
  %s11 = scalar_select 0, %s10, %s8
  $region1: #{tpu_custom_call.1} parent=0
    #allocation2 [shape = 'u8[4096]{0}', space=vmem, size = 0x1000, scoped, tag = 'input window, operand 0, single buffered']
    #allocation3 [shape = 's32[1]{0}', space=sflag, size = 0x4, scoped, tag = 'scoped memory for tpu_custom_call.1']
    #allocation4 [shape = 's32[1]{0}', space=sflag, size = 0x4, scoped, tag = 'scoped memory for tpu_custom_call.1']
    #allocation5 [shape = 'u8[8192]{0}', space=vmem, size = 0x2000, scoped, tag = 'input window, operand 1, single buffered']
    #allocation6 [shape = 's32[1]{0}', space=sflag, size = 0x4, scoped, tag = 'scoped memory for tpu_custom_call.1']
    #allocation7 [shape = 'u8[65536]{0}', space=vmem, size = 0x10000, scoped, tag = 'input window, operand 3, single buffered']
    #allocation8 [shape = 'u8[65536]{0}', space=vmem, size = 0x10000, scoped, tag = 'input window, operand 5, single buffered']
    #allocation9 [shape = 's32[1]{0}', space=sflag, size = 0x4, scoped, tag = 'scoped memory for tpu_custom_call.1']
    #allocation10 [shape = 'u8[4096]{0}', space=vmem, size = 0x1000, scoped, tag = 'output window, operand 0, single buffered']
    %12 = vsyncpa [#allocation3], 0
    %13 = vsyncpa [#allocation6], 0
    %14 = vsyncpa [#allocation9], 0
    %15 = vsyncpa [#allocation4], 0
    // Predicated region
    $region2: #{tpu_custom_call.1} parent=1 // pred_check
      _
    $region3: #{tpu_custom_call.1} parent=1 // pred_check_branch
      %17 = sbr.rel (0) target = $region5
    $region4: #{tpu_custom_call.1} parent=1 // pred_region
      %s19 = ssub.s32 128, 128
      %20 = vsyncadd [#allocation3], %s19
      %s22 = sshll.u32 [#allocation2], 4
      %s23 = int_to_ptr.vmem [resolvable:$true] %s22
      %25 = dma.hbm_to_vmem [thread:$0]  %s0, 128, %s23, [#allocation3]
    $region5: #{tpu_custom_call.1} parent=1 // pred_fallthru
      _
    // Predicated region
    $region6: #{tpu_custom_call.1} parent=1 // pred_check
      _
    $region7: #{tpu_custom_call.1} parent=1 // pred_check_branch
      %27 = sbr.rel (0) target = $region9
    $region8: #{tpu_custom_call.1} parent=1 // pred_region
      %s29 = ssub.s32 256, 256
      %30 = vsyncadd [#allocation6], %s29
      %s31 = sshll.u32 [#allocation5], 4
      %s32 = int_to_ptr.vmem [resolvable:$true] %s31
      %37 = dma.hbm_to_vmem [thread:$0]  %s1, 256, %s32, [#allocation6], 128, 128, 8
    $region9: #{tpu_custom_call.1} parent=1 // pred_fallthru
      _
    // Predicated region
    $region10: #{tpu_custom_call.1} parent=1 // pred_check
      _
    $region11: #{tpu_custom_call.1} parent=1 // pred_check_branch
      %39 = sbr.rel (0) target = $region13
    $region12: #{tpu_custom_call.1} parent=1 // pred_region
      _
    $region13: #{tpu_custom_call.1} parent=1 // pred_fallthru
      _
    // Predicated region
    $region14: #{tpu_custom_call.1} parent=1 // pred_check
      _
    $region15: #{tpu_custom_call.1} parent=1 // pred_check_branch
      %41 = sbr.rel (0) target = $region17
    $region16: #{tpu_custom_call.1} parent=1 // pred_region
      %s43 = ssub.s32 2048, 2048
      %44 = vsyncadd [#allocation6], %s43
      %s45 = sshll.u32 [#allocation7], 4
      %s46 = int_to_ptr.vmem [resolvable:$true] %s45
      %51 = dma.hbm_to_vmem [thread:$0]  %s3, 2048, %s46, [#allocation6], 128, 128, 8
    $region17: #{tpu_custom_call.1} parent=1 // pred_fallthru
      _
    // Predicated region
    $region18: #{tpu_custom_call.1} parent=1 // pred_check
      _
    $region19: #{tpu_custom_call.1} parent=1 // pred_check_branch
      %53 = sbr.rel (0) target = $region21
    $region20: #{tpu_custom_call.1} parent=1 // pred_region
      _
    $region21: #{tpu_custom_call.1} parent=1 // pred_fallthru
      _
    // Predicated region
    $region22: #{tpu_custom_call.1} parent=1 // pred_check
      _
    $region23: #{tpu_custom_call.1} parent=1 // pred_check_branch
      %55 = sbr.rel (0) target = $region25
    $region24: #{tpu_custom_call.1} parent=1 // pred_region
      %s57 = ssub.s32 2048, 2048
      %58 = vsyncadd [#allocation9], %s57
      %s59 = sshll.u32 [#allocation8], 4
      %s60 = int_to_ptr.vmem [resolvable:$true] %s59
      %65 = dma.hbm_to_vmem [thread:$0]  %s5, 2048, %s60, [#allocation9], 128, 128, 8
    $region25: #{tpu_custom_call.1} parent=1 // pred_fallthru
      _
    // Predicated region
    $region26: #{tpu_custom_call.1} parent=1 // pred_check
      _
    $region27: #{tpu_custom_call.1} parent=1 // pred_check_branch
      %67 = sbr.rel (0) target = $region29
    $region28: #{tpu_custom_call.1} parent=1 // pred_region
      _
    $region29: #{tpu_custom_call.1} parent=1 // pred_fallthru
      _
    // Predicated region
    $region30: #{tpu_custom_call.1} parent=1 // pred_check
      _
    $region31: #{tpu_custom_call.1} parent=1 // pred_check_branch
      %69 = sbr.rel (0) target = $region33
    $region32: #{tpu_custom_call.1} parent=1 // pred_region
      %70 = dma.done [#allocation3], 128
    $region33: #{tpu_custom_call.1} parent=1 // pred_fallthru
      _
    // Predicated region
    $region34: #{tpu_custom_call.1} parent=1 // pred_check
      _
    $region35: #{tpu_custom_call.1} parent=1 // pred_check_branch
      %72 = sbr.rel (0) target = $region37
    $region36: #{tpu_custom_call.1} parent=1 // pred_region
      %73 = dma.done [#allocation6], 256
    $region37: #{tpu_custom_call.1} parent=1 // pred_fallthru
      _
    // Predicated region
    $region38: #{tpu_custom_call.1} parent=1 // pred_check
      _
    $region39: #{tpu_custom_call.1} parent=1 // pred_check_branch
      %75 = sbr.rel (0) target = $region41
    $region40: #{tpu_custom_call.1} parent=1 // pred_region
      %76 = dma.done [#allocation6], 2048
    $region41: #{tpu_custom_call.1} parent=1 // pred_fallthru
      _
    // Predicated region
    $region42: #{tpu_custom_call.1} parent=1 // pred_check
      _
    $region43: #{tpu_custom_call.1} parent=1 // pred_check_branch
      %78 = sbr.rel (0) target = $region45
    $region44: #{tpu_custom_call.1} parent=1 // pred_region
      %79 = dma.done [#allocation9], 2048
    $region45: #{tpu_custom_call.1} parent=1 // pred_fallthru
      _
    %v80 = vld [vmem:[#allocation2] sm:$0xff]
    %v81 = vld [vmem:[#allocation5] sm:$0xff]
    %v82 = vld [vmem:[#allocation5 + $0x8] sm:$0xff]
    %v83 = vld [vmem:[%s2] sm:$0x1]
    %v85 = vlaneseq
    %v86 = vshrl.u32 %v85, 7
    %v87 = vsub.s32 0, %v86
    %v88 = vrot.slane %v83, %v87
    %vm90 = vcmask 130048
    %v92 = vsel %vm90, %v80, 0
    %94 = vmatprep.subr.mxu0 0.0
    %95 = vmatpush1.msra.mxu0 %v81
    %96 = vmatprep.subr.mxu0 0.0
    %97 = vmatpush1.msra.mxu0 %v82
    %98 = vmatprep.subr.mxu0 0.0
    %99 = vmatpush1.msra.mxu0 0.0
    %100 = vmatprep.subr.mxu0 0.0
    %101 = vmatpush1.msra.mxu0 0.0
    %102 = vmatprep.subr.mxu0 0.0
    %103 = vmatpush1.msra.mxu0 0.0
    %104 = vmatprep.subr.mxu0 0.0
    %105 = vmatpush1.msra.mxu0 0.0
    %106 = vmatprep.subr.mxu0 0.0
    %107 = vmatpush1.msra.mxu0 0.0
    %108 = vmatprep.subr.mxu0 0.0
    %109 = vmatpush1.msra.mxu0 0.0
    %110 = vmatprep.subr.mxu0 0.0
    %111 = vmatpush1.msra.mxu0 0.0
    %112 = vmatprep.subr.mxu0 0.0
    %113 = vmatpush1.msra.mxu0 0.0
    %114 = vmatprep.subr.mxu0 0.0
    %115 = vmatpush1.msra.mxu0 0.0
    %116 = vmatprep.subr.mxu0 0.0
    %117 = vmatpush1.msra.mxu0 0.0
    %118 = vmatprep.subr.mxu0 0.0
    %119 = vmatpush1.msra.mxu0 0.0
    %120 = vmatprep.subr.mxu0 0.0
    %121 = vmatpush1.msra.mxu0 0.0
    %122 = vmatprep.subr.mxu0 0.0
    %123 = vmatpush1.msra.mxu0 0.0
    %124 = vmatprep.subr.mxu0 0.0
    %125 = vmatpush1.msra.mxu0 0.0
    %126 = vmatprep.subr.mxu0 0.0
    %127 = vmatpush1.msra.mxu0 0.0
    %128 = vmatprep.subr.mxu0 0.0
    %129 = vmatpush1.msra.mxu0 0.0
    %130 = vmatprep.subr.mxu0 0.0
    %131 = vmatpush1.msra.mxu0 0.0
    %132 = vmatprep.subr.mxu0 0.0
    %133 = vmatpush1.msra.mxu0 0.0
    %134 = vmatprep.subr.mxu0 0.0
    %135 = vmatpush1.msra.mxu0 0.0
    %136 = vmatprep.subr.mxu0 0.0
    %137 = vmatpush1.msra.mxu0 0.0
    %138 = vmatprep.subr.mxu0 0.0
    %139 = vmatpush1.msra.mxu0 0.0
    %140 = vmatprep.subr.mxu0 0.0
    %141 = vmatpush1.msra.mxu0 0.0
    %142 = vmatprep.subr.mxu0 0.0
    %143 = vmatpush1.msra.mxu0 0.0
    %144 = vmatprep.subr.mxu0 0.0
    %145 = vmatpush1.msra.mxu0 0.0
    %146 = vmatprep.subr.mxu0 0.0
    %147 = vmatpush1.msra.mxu0 0.0
    %148 = vmatprep.subr.mxu0 0.0
    %149 = vmatpush1.msra.mxu0 0.0
    %150 = vmatprep.subr.mxu0 0.0
    %151 = vmatpush1.msra.mxu0 0.0
    %152 = vmatprep.subr.mxu0 0.0
    %153 = vmatpush1.msra.mxu0 0.0
    %154 = vmatprep.subr.mxu0 0.0
    %155 = vmatpush1.msra.mxu0 0.0
    %156 = vmatprep.subr.mxu0 0.0
    %157 = vmatpush1.msra.mxu0 0.0
    %158 = vmatprep.mubr.f32.mxu0 0.0
    %159 = vmatmul.mubr.f32.gmra.mrb[0].mxu0 %v92
    %v160 = vpop.f32.mrb[0].mxu0
    %v161 = vadd.f32 %v88, %v160
    %v162 = vpop.f32.mrb[0].mxu0
    %163 = vdwg.mxu0
    %v164 = vtanh.pop %v161
    %v165 = vld [vmem:[#allocation7] sm:$0xff]
    %v166 = vld [vmem:[#allocation7 + $0x8] sm:$0xff]
    %v167 = vld [vmem:[#allocation7 + $0x10] sm:$0xff]
    %v168 = vld [vmem:[#allocation7 + $0x18] sm:$0xff]
    %v169 = vld [vmem:[#allocation7 + $0x20] sm:$0xff]
    %v170 = vld [vmem:[#allocation7 + $0x28] sm:$0xff]
    %v171 = vld [vmem:[#allocation7 + $0x30] sm:$0xff]
    %v172 = vld [vmem:[#allocation7 + $0x38] sm:$0xff]
    %v173 = vld [vmem:[#allocation7 + $0x40] sm:$0xff]
    %v174 = vld [vmem:[#allocation7 + $0x48] sm:$0xff]
    %v175 = vld [vmem:[#allocation7 + $0x50] sm:$0xff]
    %v176 = vld [vmem:[#allocation7 + $0x58] sm:$0xff]
    %v177 = vld [vmem:[#allocation7 + $0x60] sm:$0xff]
    %v178 = vld [vmem:[#allocation7 + $0x68] sm:$0xff]
    %v179 = vld [vmem:[#allocation7 + $0x70] sm:$0xff]
    %v180 = vld [vmem:[#allocation7 + $0x78] sm:$0xff]
    %v181 = vld [vmem:[%s4] sm:$0x1]
    %v183 = vlaneseq
    %v184 = vshrl.u32 %v183, 7
    %v185 = vsub.s32 0, %v184
    %v186 = vrot.slane %v181, %v185
    %188 = vmatprep.subr.mxu0 0.0
    %189 = vmatpush1.msra.mxu0 %v165
    %190 = vmatprep.subr.mxu0 0.0
    %191 = vmatpush1.msra.mxu0 %v166
    %192 = vmatprep.subr.mxu0 0.0
    %193 = vmatpush1.msra.mxu0 %v167
    %194 = vmatprep.subr.mxu0 0.0
    %195 = vmatpush1.msra.mxu0 %v168
    %196 = vmatprep.subr.mxu0 0.0
    %197 = vmatpush1.msra.mxu0 %v169
    %198 = vmatprep.subr.mxu0 0.0
    %199 = vmatpush1.msra.mxu0 %v170
    %200 = vmatprep.subr.mxu0 0.0
    %201 = vmatpush1.msra.mxu0 %v171
    %202 = vmatprep.subr.mxu0 0.0
    %203 = vmatpush1.msra.mxu0 %v172
    %204 = vmatprep.subr.mxu0 0.0
    %205 = vmatpush1.msra.mxu0 %v173
    %206 = vmatprep.subr.mxu0 0.0
    %207 = vmatpush1.msra.mxu0 %v174
    %208 = vmatprep.subr.mxu0 0.0
    %209 = vmatpush1.msra.mxu0 %v175
    %210 = vmatprep.subr.mxu0 0.0
    %211 = vmatpush1.msra.mxu0 %v176
    %212 = vmatprep.subr.mxu0 0.0
    %213 = vmatpush1.msra.mxu0 %v177
    %214 = vmatprep.subr.mxu0 0.0
    %215 = vmatpush1.msra.mxu0 %v178
    %216 = vmatprep.subr.mxu0 0.0
    %217 = vmatpush1.msra.mxu0 %v179
    %218 = vmatprep.subr.mxu0 0.0
    %219 = vmatpush1.msra.mxu0 %v180
    %220 = vmatprep.subr.mxu0 0.0
    %221 = vmatpush1.msra.mxu0 0.0
    %222 = vmatprep.subr.mxu0 0.0
    %223 = vmatpush1.msra.mxu0 0.0
    %224 = vmatprep.subr.mxu0 0.0
    %225 = vmatpush1.msra.mxu0 0.0
    %226 = vmatprep.subr.mxu0 0.0
    %227 = vmatpush1.msra.mxu0 0.0
    %228 = vmatprep.subr.mxu0 0.0
    %229 = vmatpush1.msra.mxu0 0.0
    %230 = vmatprep.subr.mxu0 0.0
    %231 = vmatpush1.msra.mxu0 0.0
    %232 = vmatprep.subr.mxu0 0.0
    %233 = vmatpush1.msra.mxu0 0.0
    %234 = vmatprep.subr.mxu0 0.0
    %235 = vmatpush1.msra.mxu0 0.0
    %236 = vmatprep.subr.mxu0 0.0
    %237 = vmatpush1.msra.mxu0 0.0
    %238 = vmatprep.subr.mxu0 0.0
    %239 = vmatpush1.msra.mxu0 0.0
    %240 = vmatprep.subr.mxu0 0.0
    %241 = vmatpush1.msra.mxu0 0.0
    %242 = vmatprep.subr.mxu0 0.0
    %243 = vmatpush1.msra.mxu0 0.0
    %244 = vmatprep.subr.mxu0 0.0
    %245 = vmatpush1.msra.mxu0 0.0
    %246 = vmatprep.subr.mxu0 0.0
    %247 = vmatpush1.msra.mxu0 0.0
    %248 = vmatprep.subr.mxu0 0.0
    %249 = vmatpush1.msra.mxu0 0.0
    %250 = vmatprep.subr.mxu0 0.0
    %251 = vmatpush1.msra.mxu0 0.0
    %252 = vmatprep.mubr.f32.mxu0 0.0
    %253 = vmatmul.mubr.f32.gmra.mrb[0].mxu0 %v164
    %v254 = vpop.f32.mrb[0].mxu0
    %v255 = vadd.f32 %v186, %v254
    %v256 = vpop.f32.mrb[0].mxu0
    %257 = vdwg.mxu0
    %v258 = vadd.f32 %v255, %v164
    %v259 = vtanh.pop %v258
    %v260 = vld [vmem:[#allocation8] sm:$0xff]
    %v261 = vld [vmem:[#allocation8 + $0x8] sm:$0xff]
    %v262 = vld [vmem:[#allocation8 + $0x10] sm:$0xff]
    %v263 = vld [vmem:[#allocation8 + $0x18] sm:$0xff]
    %v264 = vld [vmem:[#allocation8 + $0x20] sm:$0xff]
    %v265 = vld [vmem:[#allocation8 + $0x28] sm:$0xff]
    %v266 = vld [vmem:[#allocation8 + $0x30] sm:$0xff]
    %v267 = vld [vmem:[#allocation8 + $0x38] sm:$0xff]
    %v268 = vld [vmem:[#allocation8 + $0x40] sm:$0xff]
    %v269 = vld [vmem:[#allocation8 + $0x48] sm:$0xff]
    %v270 = vld [vmem:[#allocation8 + $0x50] sm:$0xff]
    %v271 = vld [vmem:[#allocation8 + $0x58] sm:$0xff]
    %v272 = vld [vmem:[#allocation8 + $0x60] sm:$0xff]
    %v273 = vld [vmem:[#allocation8 + $0x68] sm:$0xff]
    %v274 = vld [vmem:[#allocation8 + $0x70] sm:$0xff]
    %v275 = vld [vmem:[#allocation8 + $0x78] sm:$0xff]
    %v276 = vld [vmem:[%s6] sm:$0x1]
    %v278 = vlaneseq
    %v279 = vshrl.u32 %v278, 7
    %v280 = vsub.s32 0, %v279
    %v281 = vrot.slane %v276, %v280
    %283 = vmatprep.subr.mxu0 0.0
    %284 = vmatpush1.msra.mxu0 %v260
    %285 = vmatprep.subr.mxu0 0.0
    %286 = vmatpush1.msra.mxu0 %v261
    %287 = vmatprep.subr.mxu0 0.0
    %288 = vmatpush1.msra.mxu0 %v262
    %289 = vmatprep.subr.mxu0 0.0
    %290 = vmatpush1.msra.mxu0 %v263
    %291 = vmatprep.subr.mxu0 0.0
    %292 = vmatpush1.msra.mxu0 %v264
    %293 = vmatprep.subr.mxu0 0.0
    %294 = vmatpush1.msra.mxu0 %v265
    %295 = vmatprep.subr.mxu0 0.0
    %296 = vmatpush1.msra.mxu0 %v266
    %297 = vmatprep.subr.mxu0 0.0
    %298 = vmatpush1.msra.mxu0 %v267
    %299 = vmatprep.subr.mxu0 0.0
    %300 = vmatpush1.msra.mxu0 %v268
    %301 = vmatprep.subr.mxu0 0.0
    %302 = vmatpush1.msra.mxu0 %v269
    %303 = vmatprep.subr.mxu0 0.0
    %304 = vmatpush1.msra.mxu0 %v270
    %305 = vmatprep.subr.mxu0 0.0
    %306 = vmatpush1.msra.mxu0 %v271
    %307 = vmatprep.subr.mxu0 0.0
    %308 = vmatpush1.msra.mxu0 %v272
    %309 = vmatprep.subr.mxu0 0.0
    %310 = vmatpush1.msra.mxu0 %v273
    %311 = vmatprep.subr.mxu0 0.0
    %312 = vmatpush1.msra.mxu0 %v274
    %313 = vmatprep.subr.mxu0 0.0
    %314 = vmatpush1.msra.mxu0 %v275
    %315 = vmatprep.subr.mxu0 0.0
    %316 = vmatpush1.msra.mxu0 0.0
    %317 = vmatprep.subr.mxu0 0.0
    %318 = vmatpush1.msra.mxu0 0.0
    %319 = vmatprep.subr.mxu0 0.0
    %320 = vmatpush1.msra.mxu0 0.0
    %321 = vmatprep.subr.mxu0 0.0
    %322 = vmatpush1.msra.mxu0 0.0
    %323 = vmatprep.subr.mxu0 0.0
    %324 = vmatpush1.msra.mxu0 0.0
    %325 = vmatprep.subr.mxu0 0.0
    %326 = vmatpush1.msra.mxu0 0.0
    %327 = vmatprep.subr.mxu0 0.0
    %328 = vmatpush1.msra.mxu0 0.0
    %329 = vmatprep.subr.mxu0 0.0
    %330 = vmatpush1.msra.mxu0 0.0
    %331 = vmatprep.subr.mxu0 0.0
    %332 = vmatpush1.msra.mxu0 0.0
    %333 = vmatprep.subr.mxu0 0.0
    %334 = vmatpush1.msra.mxu0 0.0
    %335 = vmatprep.subr.mxu0 0.0
    %336 = vmatpush1.msra.mxu0 0.0
    %337 = vmatprep.subr.mxu0 0.0
    %338 = vmatpush1.msra.mxu0 0.0
    %339 = vmatprep.subr.mxu0 0.0
    %340 = vmatpush1.msra.mxu0 0.0
    %341 = vmatprep.subr.mxu0 0.0
    %342 = vmatpush1.msra.mxu0 0.0
    %343 = vmatprep.subr.mxu0 0.0
    %344 = vmatpush1.msra.mxu0 0.0
    %345 = vmatprep.subr.mxu0 0.0
    %346 = vmatpush1.msra.mxu0 0.0
    %347 = vmatprep.mubr.f32.mxu0 0.0
    %348 = vmatmul.mubr.f32.gmra.mrb[0].mxu0 %v259
    %v349 = vpop.f32.mrb[0].mxu0
    %v350 = vadd.f32 %v281, %v349
    %v351 = vpop.f32.mrb[0].mxu0
    %352 = vdwg.mxu0
    %v353 = vlaneseq
    %v354 = vand.u32 %v353, 127
    %vm355 = vcmp.ge.s32.totalorder %v354, 1
    %vm356 = vcmp.lt.s32.totalorder %v354, 6
    %vm357 = vmand %vm355, %vm356
    %v358 = vsel %vm357, %v350, -inf
    %359 = vmax.xlane.f32.xlu0 %v358
    %v360 = vpop.xlane.xlu0 %359
    %v361 = vsel %vm357, %v360, %v350
    %vm362 = vcmp.ge.s32.totalorder %v354, 6
    %vm363 = vcmp.lt.s32.totalorder %v354, 13
    %vm364 = vmand %vm362, %vm363
    %v365 = vsel %vm364, %v350, -inf
    %366 = vmax.xlane.f32.xlu0 %v365
    %v367 = vpop.xlane.xlu0 %366
    %v368 = vsel %vm364, %v367, %v361
    %v369 = vsub.f32 %v350, %v368
    %v370 = vmul.f32 %v369, 1.442695
    %v371 = vpow.pop %v370
    %v372 = vsel %vm357, %v371, 0.0
    %373 = vadd.xlane.f32.xlu0 %v372
    %v374 = vpop.xlane.xlu0 %373
    %v375 = vlog2.pop %v374
    %v376 = vmul.f32 %v375, 0.6931472
    %v377 = vadd.f32 %v360, %v376
    %v378 = vsel %vm357, %v377, 0.0
    %v379 = vsel %vm364, %v371, 0.0
    %380 = vadd.xlane.f32.xlu0 %v379
    %v381 = vpop.xlane.xlu0 %380
    %v382 = vlog2.pop %v381
    %v383 = vmul.f32 %v382, 0.6931472
    %v384 = vadd.f32 %v367, %v383
    %v385 = vsel %vm364, %v384, %v378
    %v386 = vsub.f32 %v350, %v385
    %387 = vst [vmem:[#allocation10] sm:$0xff] %v386
    // Predicated region
    $region46: #{tpu_custom_call.1} parent=1 // pred_check
      _
    $region47: #{tpu_custom_call.1} parent=1 // pred_check_branch
      %389 = sbr.rel (0) target = $region49
    $region48: #{tpu_custom_call.1} parent=1 // pred_region
      %s391 = ssub.s32 128, 128
      %392 = vsyncadd [#allocation4], %s391
      %s394 = sshll.u32 [#allocation10], 4
      %s395 = int_to_ptr.vmem [resolvable:$true] %s394
      %397 = dma.vmem_to_hbm [thread:$0]  %s395, 128, %s7, [#allocation4]
    $region49: #{tpu_custom_call.1} parent=1 // pred_fallthru
      _
    // Predicated region
    $region50: #{tpu_custom_call.1} parent=1 // pred_check
      _
    $region51: #{tpu_custom_call.1} parent=1 // pred_check_branch
      %399 = sbr.rel (0) target = $region53
    $region52: #{tpu_custom_call.1} parent=1 // pred_region
      %400 = dma.done [#allocation4], 128
    $region53: #{tpu_custom_call.1} parent=1 // pred_fallthru
      _
    %401 = vsyncpa [#allocation3], 1
    %402 = vsyncpa [#allocation6], 1
    %403 = vsyncpa [#allocation9], 1
    %404 = vsyncpa [#allocation4], 1

// kernel: tpu_custom_call.1
$region0: #{tpu_custom_call.1}
  #allocation0 [shape = 'u32[]', space=smem, size = 0x4, offset = 0x4, fixed_abs, tag = 'smem constant byte address 0x4 - core index']
  #allocation1 [shape = 'u32[144,128]{1,0:T(1,128)}', space=vmem, size = 0x12000, scoped, tag = 'internal scratch']
  %s0 = inlined_call_operand.hbm [shape: f32[8,16], index: 0, kind: input, shape index: {}]
  %s1 = inlined_call_operand.hbm [shape: f32[16,128], index: 1, kind: input, shape index: {}]
  %s2 = inlined_call_operand.vmem [shape: f32[1,128], index: 2, kind: input, shape index: {}]
  %s3 = inlined_call_operand.hbm [shape: f32[128,128], index: 3, kind: input, shape index: {}]
  %s4 = inlined_call_operand.vmem [shape: f32[1,128], index: 4, kind: input, shape index: {}]
  %s5 = inlined_call_operand.hbm [shape: f32[128,128], index: 5, kind: input, shape index: {}]
  %s6 = inlined_call_operand.vmem [shape: f32[1,128], index: 6, kind: input, shape index: {}]
  %s7 = inlined_call_operand.hbm [shape: f32[8,128], index: 7, kind: output, shape index: {}]
  %s8 = sld [smem:[#allocation0]]
  $region54: #{tpu_custom_call.1} parent=0
    _
  %s10 = ssub.s32 1, %s8
  %s11 = scalar_select 0, %s10, %s8
  $region1: #{tpu_custom_call.1} parent=0
    #allocation2 [shape = 'u8[4096]{0}', space=vmem, size = 0x1000, scoped, tag = 'input window, operand 0, single buffered']
    #allocation3 [shape = 's32[1]{0}', space=sflag, size = 0x4, scoped, tag = 'scoped memory for tpu_custom_call.1']
    #allocation4 [shape = 's32[1]{0}', space=sflag, size = 0x4, scoped, tag = 'scoped memory for tpu_custom_call.1']
    #allocation5 [shape = 'u8[8192]{0}', space=vmem, size = 0x2000, scoped, tag = 'input window, operand 1, single buffered']
    #allocation6 [shape = 's32[1]{0}', space=sflag, size = 0x4, scoped, tag = 'scoped memory for tpu_custom_call.1']
    #allocation7 [shape = 'u8[65536]{0}', space=vmem, size = 0x10000, scoped, tag = 'input window, operand 3, single buffered']
    #allocation8 [shape = 'u8[65536]{0}', space=vmem, size = 0x10000, scoped, tag = 'input window, operand 5, single buffered']
    #allocation9 [shape = 's32[1]{0}', space=sflag, size = 0x4, scoped, tag = 'scoped memory for tpu_custom_call.1']
    #allocation10 [shape = 'u8[4096]{0}', space=vmem, size = 0x1000, scoped, tag = 'output window, operand 0, single buffered']
    %12 = vsyncpa [#allocation3], 0
    %13 = vsyncpa [#allocation6], 0
    %14 = vsyncpa [#allocation9], 0
    %15 = vsyncpa [#allocation4], 0
    // Predicated region
    $region2: #{tpu_custom_call.1} parent=1 // pred_check
      _
    $region3: #{tpu_custom_call.1} parent=1 // pred_check_branch
      %17 = sbr.rel (0) target = $region5
    $region4: #{tpu_custom_call.1} parent=1 // pred_region
      %s19 = ssub.s32 128, 128
      %20 = vsyncadd [#allocation3], %s19
      %s22 = sshll.u32 [#allocation2], 4
      %s23 = int_to_ptr.vmem [resolvable:$true] %s22
      %25 = dma.hbm_to_vmem [thread:$0]  %s0, 128, %s23, [#allocation3]
    $region5: #{tpu_custom_call.1} parent=1 // pred_fallthru
      _
    // Predicated region
    $region6: #{tpu_custom_call.1} parent=1 // pred_check
      _
    $region7: #{tpu_custom_call.1} parent=1 // pred_check_branch
      %27 = sbr.rel (0) target = $region9
    $region8: #{tpu_custom_call.1} parent=1 // pred_region
      %s29 = ssub.s32 256, 256
      %30 = vsyncadd [#allocation6], %s29
      %s31 = sshll.u32 [#allocation5], 4
      %s32 = int_to_ptr.vmem [resolvable:$true] %s31
      %37 = dma.hbm_to_vmem [thread:$0]  %s1, 256, %s32, [#allocation6], 128, 128, 8
    $region9: #{tpu_custom_call.1} parent=1 // pred_fallthru
      _
    // Predicated region
    $region10: #{tpu_custom_call.1} parent=1 // pred_check
      _
    $region11: #{tpu_custom_call.1} parent=1 // pred_check_branch
      %39 = sbr.rel (0) target = $region13
    $region12: #{tpu_custom_call.1} parent=1 // pred_region
      _
    $region13: #{tpu_custom_call.1} parent=1 // pred_fallthru
      _
    // Predicated region
    $region14: #{tpu_custom_call.1} parent=1 // pred_check
      _
    $region15: #{tpu_custom_call.1} parent=1 // pred_check_branch
      %41 = sbr.rel (0) target = $region17
    $region16: #{tpu_custom_call.1} parent=1 // pred_region
      %s43 = ssub.s32 2048, 2048
      %44 = vsyncadd [#allocation6], %s43
      %s45 = sshll.u32 [#allocation7], 4
      %s46 = int_to_ptr.vmem [resolvable:$true] %s45
      %51 = dma.hbm_to_vmem [thread:$0]  %s3, 2048, %s46, [#allocation6], 128, 128, 8
    $region17: #{tpu_custom_call.1} parent=1 // pred_fallthru
      _
    // Predicated region
    $region18: #{tpu_custom_call.1} parent=1 // pred_check
      _
    $region19: #{tpu_custom_call.1} parent=1 // pred_check_branch
      %53 = sbr.rel (0) target = $region21
    $region20: #{tpu_custom_call.1} parent=1 // pred_region
      _
    $region21: #{tpu_custom_call.1} parent=1 // pred_fallthru
      _
    // Predicated region
    $region22: #{tpu_custom_call.1} parent=1 // pred_check
      _
    $region23: #{tpu_custom_call.1} parent=1 // pred_check_branch
      %55 = sbr.rel (0) target = $region25
    $region24: #{tpu_custom_call.1} parent=1 // pred_region
      %s57 = ssub.s32 2048, 2048
      %58 = vsyncadd [#allocation9], %s57
      %s59 = sshll.u32 [#allocation8], 4
      %s60 = int_to_ptr.vmem [resolvable:$true] %s59
      %65 = dma.hbm_to_vmem [thread:$0]  %s5, 2048, %s60, [#allocation9], 128, 128, 8
    $region25: #{tpu_custom_call.1} parent=1 // pred_fallthru
      _
    // Predicated region
    $region26: #{tpu_custom_call.1} parent=1 // pred_check
      _
    $region27: #{tpu_custom_call.1} parent=1 // pred_check_branch
      %67 = sbr.rel (0) target = $region29
    $region28: #{tpu_custom_call.1} parent=1 // pred_region
      _
    $region29: #{tpu_custom_call.1} parent=1 // pred_fallthru
      _
    // Predicated region
    $region30: #{tpu_custom_call.1} parent=1 // pred_check
      _
    $region31: #{tpu_custom_call.1} parent=1 // pred_check_branch
      %69 = sbr.rel (0) target = $region33
    $region32: #{tpu_custom_call.1} parent=1 // pred_region
      %70 = dma.done [#allocation3], 128
    $region33: #{tpu_custom_call.1} parent=1 // pred_fallthru
      _
    // Predicated region
    $region34: #{tpu_custom_call.1} parent=1 // pred_check
      _
    $region35: #{tpu_custom_call.1} parent=1 // pred_check_branch
      %72 = sbr.rel (0) target = $region37
    $region36: #{tpu_custom_call.1} parent=1 // pred_region
      %73 = dma.done [#allocation6], 256
    $region37: #{tpu_custom_call.1} parent=1 // pred_fallthru
      _
    // Predicated region
    $region38: #{tpu_custom_call.1} parent=1 // pred_check
      _
    $region39: #{tpu_custom_call.1} parent=1 // pred_check_branch
      %75 = sbr.rel (0) target = $region41
    $region40: #{tpu_custom_call.1} parent=1 // pred_region
      %76 = dma.done [#allocation6], 2048
    $region41: #{tpu_custom_call.1} parent=1 // pred_fallthru
      _
    // Predicated region
    $region42: #{tpu_custom_call.1} parent=1 // pred_check
      _
    $region43: #{tpu_custom_call.1} parent=1 // pred_check_branch
      %78 = sbr.rel (0) target = $region45
    $region44: #{tpu_custom_call.1} parent=1 // pred_region
      %79 = dma.done [#allocation9], 2048
    $region45: #{tpu_custom_call.1} parent=1 // pred_fallthru
      _
    %v80 = vld [vmem:[#allocation2] sm:$0xff]
    %v81 = vld [vmem:[#allocation5] sm:$0xff]
    %v82 = vld [vmem:[#allocation5 + $0x8] sm:$0xff]
    %v83 = vld [vmem:[%s2] sm:$0x1]
    %v85 = vlaneseq
    %v86 = vshrl.u32 %v85, 7
    %v87 = vsub.s32 0, %v86
    %v88 = vrot.slane %v83, %v87
    %vm90 = vcmask 130048
    %v92 = vsel %vm90, %v80, 0
    %94 = vmatprep.subr.mxu0 0.0
    %95 = vmatpush1.msra.mxu0 %v81
    %96 = vmatprep.subr.mxu0 0.0
    %97 = vmatpush1.msra.mxu0 %v82
    %98 = vmatprep.subr.mxu0 0.0
    %99 = vmatpush1.msra.mxu0 0.0
    %100 = vmatprep.subr.mxu0 0.0
    %101 = vmatpush1.msra.mxu0 0.0
    %102 = vmatprep.subr.mxu0 0.0
    %103 = vmatpush1.msra.mxu0 0.0
    %104 = vmatprep.subr.mxu0 0.0
    %105 = vmatpush1.msra.mxu0 0.0
    %106 = vmatprep.subr.mxu0 0.0
    %107 = vmatpush1.msra.mxu0 0.0
    %108 = vmatprep.subr.mxu0 0.0
    %109 = vmatpush1.msra.mxu0 0.0
    %110 = vmatprep.subr.mxu0 0.0
    %111 = vmatpush1.msra.mxu0 0.0
    %112 = vmatprep.subr.mxu0 0.0
    %113 = vmatpush1.msra.mxu0 0.0
    %114 = vmatprep.subr.mxu0 0.0
    %115 = vmatpush1.msra.mxu0 0.0
    %116 = vmatprep.subr.mxu0 0.0
    %117 = vmatpush1.msra.mxu0 0.0
    %118 = vmatprep.subr.mxu0 0.0
    %119 = vmatpush1.msra.mxu0 0.0
    %120 = vmatprep.subr.mxu0 0.0
    %121 = vmatpush1.msra.mxu0 0.0
    %122 = vmatprep.subr.mxu0 0.0
    %123 = vmatpush1.msra.mxu0 0.0
    %124 = vmatprep.subr.mxu0 0.0
    %125 = vmatpush1.msra.mxu0 0.0
    %126 = vmatprep.subr.mxu0 0.0
    %127 = vmatpush1.msra.mxu0 0.0
    %128 = vmatprep.subr.mxu0 0.0
    %129 = vmatpush1.msra.mxu0 0.0
    %130 = vmatprep.subr.mxu0 0.0
    %131 = vmatpush1.msra.mxu0 0.0
    %132 = vmatprep.subr.mxu0 0.0
    %133 = vmatpush1.msra.mxu0 0.0
    %134 = vmatprep.subr.mxu0 0.0
    %135 = vmatpush1.msra.mxu0 0.0
    %136 = vmatprep.subr.mxu0 0.0
    %137 = vmatpush1.msra.mxu0 0.0
    %138 = vmatprep.subr.mxu0 0.0
    %139 = vmatpush1.msra.mxu0 0.0
    %140 = vmatprep.subr.mxu0 0.0
    %141 = vmatpush1.msra.mxu0 0.0
    %142 = vmatprep.subr.mxu0 0.0
    %143 = vmatpush1.msra.mxu0 0.0
    %144 = vmatprep.subr.mxu0 0.0
    %145 = vmatpush1.msra.mxu0 0.0
    %146 = vmatprep.subr.mxu0 0.0
    %147 = vmatpush1.msra.mxu0 0.0
    %148 = vmatprep.subr.mxu0 0.0
    %149 = vmatpush1.msra.mxu0 0.0
    %150 = vmatprep.subr.mxu0 0.0
    %151 = vmatpush1.msra.mxu0 0.0
    %152 = vmatprep.subr.mxu0 0.0
    %153 = vmatpush1.msra.mxu0 0.0
    %154 = vmatprep.subr.mxu0 0.0
    %155 = vmatpush1.msra.mxu0 0.0
    %156 = vmatprep.subr.mxu0 0.0
    %157 = vmatpush1.msra.mxu0 0.0
    %158 = vmatprep.mubr.f32.mxu0 0.0
    %159 = vmatmul.mubr.f32.gmra.mrb[0].mxu0 %v92
    %v160 = vpop.f32.mrb[0].mxu0
    %v161 = vadd.f32 %v88, %v160
    %v162 = vpop.f32.mrb[0].mxu0
    %163 = vdwg.mxu0
    %v164 = vtanh.pop %v161
    %v165 = vld [vmem:[#allocation7] sm:$0xff]
    %v166 = vld [vmem:[#allocation7 + $0x8] sm:$0xff]
    %v167 = vld [vmem:[#allocation7 + $0x10] sm:$0xff]
    %v168 = vld [vmem:[#allocation7 + $0x18] sm:$0xff]
    %v169 = vld [vmem:[#allocation7 + $0x20] sm:$0xff]
    %v170 = vld [vmem:[#allocation7 + $0x28] sm:$0xff]
    %v171 = vld [vmem:[#allocation7 + $0x30] sm:$0xff]
    %v172 = vld [vmem:[#allocation7 + $0x38] sm:$0xff]
    %v173 = vld [vmem:[#allocation7 + $0x40] sm:$0xff]
    %v174 = vld [vmem:[#allocation7 + $0x48] sm:$0xff]
    %v175 = vld [vmem:[#allocation7 + $0x50] sm:$0xff]
    %v176 = vld [vmem:[#allocation7 + $0x58] sm:$0xff]
    %v177 = vld [vmem:[#allocation7 + $0x60] sm:$0xff]
    %v178 = vld [vmem:[#allocation7 + $0x68] sm:$0xff]
    %v179 = vld [vmem:[#allocation7 + $0x70] sm:$0xff]
    %v180 = vld [vmem:[#allocation7 + $0x78] sm:$0xff]
    %v181 = vld [vmem:[%s4] sm:$0x1]
    %v183 = vlaneseq
    %v184 = vshrl.u32 %v183, 7
    %v185 = vsub.s32 0, %v184
    %v186 = vrot.slane %v181, %v185
    %188 = vmatprep.subr.mxu0 0.0
    %189 = vmatpush1.msra.mxu0 %v165
    %190 = vmatprep.subr.mxu0 0.0
    %191 = vmatpush1.msra.mxu0 %v166
    %192 = vmatprep.subr.mxu0 0.0
    %193 = vmatpush1.msra.mxu0 %v167
    %194 = vmatprep.subr.mxu0 0.0
    %195 = vmatpush1.msra.mxu0 %v168
    %196 = vmatprep.subr.mxu0 0.0
    %197 = vmatpush1.msra.mxu0 %v169
    %198 = vmatprep.subr.mxu0 0.0
    %199 = vmatpush1.msra.mxu0 %v170
    %200 = vmatprep.subr.mxu0 0.0
    %201 = vmatpush1.msra.mxu0 %v171
    %202 = vmatprep.subr.mxu0 0.0
    %203 = vmatpush1.msra.mxu0 %v172
    %204 = vmatprep.subr.mxu0 0.0
    %205 = vmatpush1.msra.mxu0 %v173
    %206 = vmatprep.subr.mxu0 0.0
    %207 = vmatpush1.msra.mxu0 %v174
    %208 = vmatprep.subr.mxu0 0.0
    %209 = vmatpush1.msra.mxu0 %v175
    %210 = vmatprep.subr.mxu0 0.0
    %211 = vmatpush1.msra.mxu0 %v176
    %212 = vmatprep.subr.mxu0 0.0
    %213 = vmatpush1.msra.mxu0 %v177
    %214 = vmatprep.subr.mxu0 0.0
    %215 = vmatpush1.msra.mxu0 %v178
    %216 = vmatprep.subr.mxu0 0.0
    %217 = vmatpush1.msra.mxu0 %v179
    %218 = vmatprep.subr.mxu0 0.0
    %219 = vmatpush1.msra.mxu0 %v180
    %220 = vmatprep.subr.mxu0 0.0
    %221 = vmatpush1.msra.mxu0 0.0
    %222 = vmatprep.subr.mxu0 0.0
    %223 = vmatpush1.msra.mxu0 0.0
    %224 = vmatprep.subr.mxu0 0.0
    %225 = vmatpush1.msra.mxu0 0.0
    %226 = vmatprep.subr.mxu0 0.0
    %227 = vmatpush1.msra.mxu0 0.0
    %228 = vmatprep.subr.mxu0 0.0
    %229 = vmatpush1.msra.mxu0 0.0
    %230 = vmatprep.subr.mxu0 0.0
    %231 = vmatpush1.msra.mxu0 0.0
    %232 = vmatprep.subr.mxu0 0.0
    %233 = vmatpush1.msra.mxu0 0.0
    %234 = vmatprep.subr.mxu0 0.0
    %235 = vmatpush1.msra.mxu0 0.0
    %236 = vmatprep.subr.mxu0 0.0
    %237 = vmatpush1.msra.mxu0 0.0
    %238 = vmatprep.subr.mxu0 0.0
    %239 = vmatpush1.msra.mxu0 0.0
    %240 = vmatprep.subr.mxu0 0.0
    %241 = vmatpush1.msra.mxu0 0.0
    %242 = vmatprep.subr.mxu0 0.0
    %243 = vmatpush1.msra.mxu0 0.0
    %244 = vmatprep.subr.mxu0 0.0
    %245 = vmatpush1.msra.mxu0 0.0
    %246 = vmatprep.subr.mxu0 0.0
    %247 = vmatpush1.msra.mxu0 0.0
    %248 = vmatprep.subr.mxu0 0.0
    %249 = vmatpush1.msra.mxu0 0.0
    %250 = vmatprep.subr.mxu0 0.0
    %251 = vmatpush1.msra.mxu0 0.0
    %252 = vmatprep.mubr.f32.mxu0 0.0
    %253 = vmatmul.mubr.f32.gmra.mrb[0].mxu0 %v164
    %v254 = vpop.f32.mrb[0].mxu0
    %v255 = vadd.f32 %v186, %v254
    %v256 = vpop.f32.mrb[0].mxu0
    %257 = vdwg.mxu0
    %v258 = vadd.f32 %v255, %v164
    %v259 = vtanh.pop %v258
    %v260 = vld [vmem:[#allocation8] sm:$0xff]
    %v261 = vld [vmem:[#allocation8 + $0x8] sm:$0xff]
    %v262 = vld [vmem:[#allocation8 + $0x10] sm:$0xff]
    %v263 = vld [vmem:[#allocation8 + $0x18] sm:$0xff]
    %v264 = vld [vmem:[#allocation8 + $0x20] sm:$0xff]
    %v265 = vld [vmem:[#allocation8 + $0x28] sm:$0xff]
    %v266 = vld [vmem:[#allocation8 + $0x30] sm:$0xff]
    %v267 = vld [vmem:[#allocation8 + $0x38] sm:$0xff]
    %v268 = vld [vmem:[#allocation8 + $0x40] sm:$0xff]
    %v269 = vld [vmem:[#allocation8 + $0x48] sm:$0xff]
    %v270 = vld [vmem:[#allocation8 + $0x50] sm:$0xff]
    %v271 = vld [vmem:[#allocation8 + $0x58] sm:$0xff]
    %v272 = vld [vmem:[#allocation8 + $0x60] sm:$0xff]
    %v273 = vld [vmem:[#allocation8 + $0x68] sm:$0xff]
    %v274 = vld [vmem:[#allocation8 + $0x70] sm:$0xff]
    %v275 = vld [vmem:[#allocation8 + $0x78] sm:$0xff]
    %v276 = vld [vmem:[%s6] sm:$0x1]
    %v278 = vlaneseq
    %v279 = vshrl.u32 %v278, 7
    %v280 = vsub.s32 0, %v279
    %v281 = vrot.slane %v276, %v280
    %283 = vmatprep.subr.mxu0 0.0
    %284 = vmatpush1.msra.mxu0 %v260
    %285 = vmatprep.subr.mxu0 0.0
    %286 = vmatpush1.msra.mxu0 %v261
    %287 = vmatprep.subr.mxu0 0.0
    %288 = vmatpush1.msra.mxu0 %v262
    %289 = vmatprep.subr.mxu0 0.0
    %290 = vmatpush1.msra.mxu0 %v263
    %291 = vmatprep.subr.mxu0 0.0
    %292 = vmatpush1.msra.mxu0 %v264
    %293 = vmatprep.subr.mxu0 0.0
    %294 = vmatpush1.msra.mxu0 %v265
    %295 = vmatprep.subr.mxu0 0.0
    %296 = vmatpush1.msra.mxu0 %v266
    %297 = vmatprep.subr.mxu0 0.0
    %298 = vmatpush1.msra.mxu0 %v267
    %299 = vmatprep.subr.mxu0 0.0
    %300 = vmatpush1.msra.mxu0 %v268
    %301 = vmatprep.subr.mxu0 0.0
    %302 = vmatpush1.msra.mxu0 %v269
    %303 = vmatprep.subr.mxu0 0.0
    %304 = vmatpush1.msra.mxu0 %v270
    %305 = vmatprep.subr.mxu0 0.0
    %306 = vmatpush1.msra.mxu0 %v271
    %307 = vmatprep.subr.mxu0 0.0
    %308 = vmatpush1.msra.mxu0 %v272
    %309 = vmatprep.subr.mxu0 0.0
    %310 = vmatpush1.msra.mxu0 %v273
    %311 = vmatprep.subr.mxu0 0.0
    %312 = vmatpush1.msra.mxu0 %v274
    %313 = vmatprep.subr.mxu0 0.0
    %314 = vmatpush1.msra.mxu0 %v275
    %315 = vmatprep.subr.mxu0 0.0
    %316 = vmatpush1.msra.mxu0 0.0
    %317 = vmatprep.subr.mxu0 0.0
    %318 = vmatpush1.msra.mxu0 0.0
    %319 = vmatprep.subr.mxu0 0.0
    %320 = vmatpush1.msra.mxu0 0.0
    %321 = vmatprep.subr.mxu0 0.0
    %322 = vmatpush1.msra.mxu0 0.0
    %323 = vmatprep.subr.mxu0 0.0
    %324 = vmatpush1.msra.mxu0 0.0
    %325 = vmatprep.subr.mxu0 0.0
    %326 = vmatpush1.msra.mxu0 0.0
    %327 = vmatprep.subr.mxu0 0.0
    %328 = vmatpush1.msra.mxu0 0.0
    %329 = vmatprep.subr.mxu0 0.0
    %330 = vmatpush1.msra.mxu0 0.0
    %331 = vmatprep.subr.mxu0 0.0
    %332 = vmatpush1.msra.mxu0 0.0
    %333 = vmatprep.subr.mxu0 0.0
    %334 = vmatpush1.msra.mxu0 0.0
    %335 = vmatprep.subr.mxu0 0.0
    %336 = vmatpush1.msra.mxu0 0.0
    %337 = vmatprep.subr.mxu0 0.0
    %338 = vmatpush1.msra.mxu0 0.0
    %339 = vmatprep.subr.mxu0 0.0
    %340 = vmatpush1.msra.mxu0 0.0
    %341 = vmatprep.subr.mxu0 0.0
    %342 = vmatpush1.msra.mxu0 0.0
    %343 = vmatprep.subr.mxu0 0.0
    %344 = vmatpush1.msra.mxu0 0.0
    %345 = vmatprep.subr.mxu0 0.0
    %346 = vmatpush1.msra.mxu0 0.0
    %347 = vmatprep.mubr.f32.mxu0 0.0
    %348 = vmatmul.mubr.f32.gmra.mrb[0].mxu0 %v259
    %v349 = vpop.f32.mrb[0].mxu0
    %v350 = vadd.f32 %v281, %v349
    %v351 = vpop.f32.mrb[0].mxu0
    %352 = vdwg.mxu0
    %v353 = vlaneseq
    %v354 = vand.u32 %v353, 127
    %vm355 = vcmp.ge.s32.totalorder %v354, 1
    %vm356 = vcmp.lt.s32.totalorder %v354, 6
    %vm357 = vmand %vm355, %vm356
    %v358 = vsel %vm357, %v350, -inf
    %359 = vmax.xlane.f32.xlu0 %v358
    %v360 = vpop.xlane.xlu0 %359
    %v361 = vsel %vm357, %v360, %v350
    %vm362 = vcmp.ge.s32.totalorder %v354, 6
    %vm363 = vcmp.lt.s32.totalorder %v354, 13
    %vm364 = vmand %vm362, %vm363
    %v365 = vsel %vm364, %v350, -inf
    %366 = vmax.xlane.f32.xlu0 %v365
    %v367 = vpop.xlane.xlu0 %366
    %v368 = vsel %vm364, %v367, %v361
    %v369 = vsub.f32 %v350, %v368
    %v370 = vmul.f32 %v369, 1.442695
    %v371 = vpow.pop %v370
    %v372 = vsel %vm357, %v371, 0.0
    %373 = vadd.xlane.f32.xlu0 %v372
    %v374 = vpop.xlane.xlu0 %373
    %v375 = vlog2.pop %v374
    %v376 = vmul.f32 %v375, 0.6931472
    %v377 = vadd.f32 %v360, %v376
    %v378 = vsel %vm357, %v377, 0.0
    %v379 = vsel %vm364, %v371, 0.0
    %380 = vadd.xlane.f32.xlu0 %v379
    %v381 = vpop.xlane.xlu0 %380
    %v382 = vlog2.pop %v381
    %v383 = vmul.f32 %v382, 0.6931472
    %v384 = vadd.f32 %v367, %v383
    %v385 = vsel %vm364, %v384, %v378
    %v386 = vsub.f32 %v350, %v385
    %387 = vst [vmem:[#allocation10] sm:$0xff] %v386
    // Predicated region
    $region46: #{tpu_custom_call.1} parent=1 // pred_check
      _
    $region47: #{tpu_custom_call.1} parent=1 // pred_check_branch
      %389 = sbr.rel (0) target = $region49
    $region48: #{tpu_custom_call.1} parent=1 // pred_region
      %s391 = ssub.s32 128, 128
      %392 = vsyncadd [#allocation4], %s391
      %s394 = sshll.u32 [#allocation10], 4
      %s395 = int_to_ptr.vmem [resolvable:$true] %s394
      %397 = dma.vmem_to_hbm [thread:$0]  %s395, 128, %s7, [#allocation4]
    $region49: #{tpu_custom_call.1} parent=1 // pred_fallthru
      _
    // Predicated region
    $region50: #{tpu_custom_call.1} parent=1 // pred_check
      _
    $region51: #{tpu_custom_call.1} parent=1 // pred_check_branch
      %399 = sbr.rel (0) target = $region53
    $region52: #{tpu_custom_call.1} parent=1 // pred_region
      %400 = dma.done [#allocation4], 128
    $region53: #{tpu_custom_call.1} parent=1 // pred_fallthru
      _
    %401 = vsyncpa [#allocation3], 1
    %402 = vsyncpa [#allocation6], 1
    %403 = vsyncpa [#allocation9], 1
    %404 = vsyncpa [#allocation4], 1

</llo_original>
